<compile_context>
chip_gen: v7x
topology: tpu7x:2x2x1
jax: 0.10.0
libtpu: 0.0.40
codegen_flags: <defaults>
</compile_context>

<pallas_src>
import functools

import jax
import jax.numpy as jnp
from jax.experimental import pallas as pl
from jax.experimental.pallas import tpu as pltpu


def _round_up(x, m):
    return ((x + m - 1) // m) * m


def _vmem_capacity_bytes():
    try:
        info = pltpu.get_tpu_info()
        cap = getattr(info, "vmem_capacity_bytes", None)
        if cap:
            return int(cap)
    except Exception:
        pass
    return 64 * 1024 * 1024          # conservative default: v7x = 64 MiB / TC


def _pick_block_b(B, V, L, W, in_itemsize, out_itemsize, budget_bytes,
                  min_grid_steps=16, max_unroll=64):
    """Largest batch tile that (a) divides B, (b) fits the *padded*,
    double-buffered x/out blocks plus the resident A inside `budget_bytes`,
    (c) leaves a grid of >= min_grid_steps steps so the DMA pipeline (and
    v7x's 2 TensorCores) stay busy, and (d) bounds the unrolled loop."""
    vp = _round_up(V, 8)             # V -> sublanes of the x block
    llane = _round_up(L, 128)        # L -> lanes of the x block
    lsub = _round_up(max(L, 1), 8)   # L -> sublanes of the out block
    wp = _round_up(W, 128)           # W -> lanes of the out block / A block

    a_bytes = 2 * vp * wp * in_itemsize              # A (double-buffered)
    y_bytes = 4 * lsub * wp * 4                      # live f32 matmul results
    per_row = 2 * (vp * llane * in_itemsize          # x row  (double-buffered)
                   + lsub * wp * out_itemsize)       # out row (double-buffered)

    avail = budget_bytes - a_bytes - y_bytes
    cap = max(1, avail // per_row) if avail > 0 else 1
    steps = min(min_grid_steps, B)
    cap = int(min(cap, max(1, B // steps), max_unroll, B))
    for t in range(cap, 0, -1):
        if B % t == 0:               # NOTE: prime B degrades to tb=1 (correct,
            return t                 # just more grid steps).
    return 1


def _nconv_kernel(a_ref, x_ref, o_ref):
    a = a_ref[...]                                   # (V, W), VMEM-resident
    tb = x_ref.shape[0]
    # Fully-unrolled loop of 2-D MXU matmuls (weight-stationary A, no
    # broadcast).  Each dot: M=L, K=V, N=W with W on lanes -> lane-dense out.
    for i in range(tb):
        y = jax.lax.dot_general(
            x_ref[i], a,                             # (V, L) x (V, W)
            dimension_numbers=(((0,), (0,)), ((), ())),
            preferred_element_type=jnp.float32)      # -> (L, W), f32 acc
        o_ref[i] = y.astype(o_ref.dtype)


def nconv(x, A, *, block_b=None, interpret=False):
    """Pallas TPU implementation of einsum('ncvl,vw->ncwl', x, A)."""
    N, C, V, L = x.shape
    Va, W = A.shape
    if Va != V:
        raise ValueError(f"A first dim {Va} != x spatial dim {V}")
    B = N * C

    x3 = x.reshape(B, V, L)              # free reshape, same HBM layout
    A = A.astype(x.dtype)                # deliberate: match x dtype (f32 acc in-kernel)

    in_isz = jnp.dtype(x.dtype).itemsize
    out_isz = in_isz
    capacity = _vmem_capacity_bytes()
    budget = max(4 * 1024 * 1024, capacity // 3)
    vmem_limit = int(min(capacity - 2 * 1024 * 1024,
                         max(32 * 1024 * 1024, 2 * budget)))

    if block_b is None:
        tb = _pick_block_b(B, V, L, W, in_isz, out_isz, budget)
    else:
        tb = max(1, min(int(block_b), B))
        while B % tb:                    # keep blocks even (unmasked tiles)
            tb -= 1

    grid = (B // tb,)
    out3 = pl.pallas_call(
        _nconv_kernel,
        out_shape=jax.ShapeDtypeStruct((B, L, W), x.dtype),
        grid=grid,
        in_specs=[
            pl.BlockSpec((V, W), lambda i: (0, 0)),         # A: resident, no re-DMA
            pl.BlockSpec((tb, V, L), lambda i: (i, 0, 0)),  # x: streamed over batch
        ],
        out_specs=pl.BlockSpec((tb, L, W), lambda i: (i, 0, 0)),
        compiler_params=pltpu.CompilerParams(
            dimension_semantics=("parallel",),              # megacore on v7x
            vmem_limit_bytes=vmem_limit),
        interpret=interpret,
    )(A, x3)

    # lane-dense kernel output (B, L, W) -> module layout (N, C, W, L)
    return jnp.swapaxes(out3, 1, 2).reshape(N, C, W, L)


def nconv_ref(x, A):
    return jnp.einsum('ncvl,vw->ncwl', x, A)


if __name__ == "__main__":
    key = jax.random.PRNGKey(0)
    kx, ka = jax.random.split(key)

    N, C, V, L = 2, 4, 16, 16
    W = V
    x = jax.random.normal(kx, (N, C, V, L), jnp.float32)
    A = jax.random.normal(ka, (V, W), jnp.float32)     # adjacency-like (V, W)

    ref = nconv_ref(x, A)
    denom = float(jnp.max(jnp.abs(ref))) + 1e-6

    # auto-tiled path
    out = jax.block_until_ready(jax.jit(nconv)(x, A))
    assert out.shape == (N, C, W, L), out.shape
    assert bool(jnp.all(jnp.isfinite(out)))
    err = float(jnp.max(jnp.abs(out - ref))) / denom
    assert err < 1e-3, err

    # explicit tile -> multi-step pipelined grid
    fwd = jax.jit(functools.partial(nconv, block_b=4))
    out2 = jax.block_until_ready(fwd(x, A))
    err2 = float(jnp.max(jnp.abs(out2 - ref))) / denom
    assert err2 < 1e-3, err2

    print("KERNEL_OK")
</pallas_src>

<mosaic_0001>
module attributes {stable_mosaic.version = 11 : i64} {
  func.func @_nconv_kernel(%arg0: i32, %arg1: memref<16x16xf32, #tpu.memory_space<vmem>>, %arg2: memref<1x16x16xf32, #tpu.memory_space<vmem>>, %arg3: memref<1x16x16xf32, #tpu.memory_space<vmem>>) attributes {dimension_semantics = [#tpu.dimension_semantics<parallel>], iteration_bounds = array<i64: 8>, scalar_prefetch = 0 : i64, scratch_operands = 0 : i64, tpu.core_type = #tpu.core_type<tc>, window_params = [{pipeline_mode = #tpu.pipeline_mode<synchronous>, transform_indices = @transform_0, window_bounds = array<i64: 16, 16>}, {transform_indices = @transform_1, window_bounds = array<i64: 1, 16, 16>}, {transform_indices = @transform_2, window_bounds = array<i64: 1, 16, 16>}]} {
    %c0 = arith.constant 0 : index
    %c0_0 = arith.constant 0 : index
    %0 = vector.load %arg1[%c0, %c0_0] : memref<16x16xf32, #tpu.memory_space<vmem>>, vector<16x16xf32>
    %c0_1 = arith.constant 0 : index
    %c0_2 = arith.constant 0 : index
    %c0_3 = arith.constant 0 : index
    %1 = vector.load %arg2[%c0_1, %c0_2, %c0_3] : memref<1x16x16xf32, #tpu.memory_space<vmem>>, vector<1x16x16xf32>
    %2 = vector.shape_cast %1 : vector<1x16x16xf32> to vector<16x16xf32>
    %cst = arith.constant dense<0.000000e+00> : vector<16x16xf32>
    %3 = tpu.matmul %2, %0, %cst {dimension_numbers = #tpu.dot_dimension_numbers<[0], [0], [1], [1], [0, 1, 1, 1], [], []>} : vector<16x16xf32>, vector<16x16xf32>, vector<16x16xf32> -> vector<16x16xf32>
    %c0_4 = arith.constant 0 : index
    %c0_5 = arith.constant 0 : index
    %c0_6 = arith.constant 0 : index
    %4 = vector.load %arg3[%c0_4, %c0_5, %c0_6] : memref<1x16x16xf32, #tpu.memory_space<vmem>>, vector<1x16x16xf32>
    %5 = vector.shape_cast %4 : vector<1x16x16xf32> to vector<16x16xf32>
    %6 = vector.shape_cast %3 : vector<16x16xf32> to vector<1x16x16xf32>
    tpu.vector_store %arg3[%c0_4, %c0_5, %c0_6], %6 {strides = array<i32>} : memref<1x16x16xf32, #tpu.memory_space<vmem>>, vector<1x16x16xf32>,
    return
  }
  func.func @transform_0(%arg0: i32) -> (i32, i32) {
    %c0_i32 = arith.constant 0 : i32
    %c0_i32_0 = arith.constant 0 : i32
    %c0_i32_1 = arith.constant 0 : i32
    return %c0_i32, %c0_i32_0 : i32, i32
  }
  func.func @transform_1(%arg0: i32) -> (i32, i32, i32) {
    %c0_i32 = arith.constant 0 : i32
    %c0_i32_0 = arith.constant 0 : i32
    %c0_i32_1 = arith.constant 0 : i32
    return %arg0, %c0_i32, %c0_i32_0 : i32, i32, i32
  }
  func.func @transform_2(%arg0: i32) -> (i32, i32, i32) {
    %c0_i32 = arith.constant 0 : i32
    %c0_i32_0 = arith.constant 0 : i32
    %c0_i32_1 = arith.constant 0 : i32
    return %arg0, %c0_i32, %c0_i32_0 : i32, i32, i32
  }
}

</mosaic_0001>

<llo_original>
// kernel: nconv.1
$region0: #{nconv.1}
  #allocation0 [shape = 'u32[]', space=smem, size = 0x4, offset = 0x4, fixed_abs, tag = 'smem constant byte address 0x4 - core index']
  #allocation1 [shape = 'u32[144,128]{1,0:T(1,128)}', space=vmem, size = 0x12000, scoped, tag = 'internal scratch']
  %s0 = inlined_call_operand.hbm [shape: f32[16,16], index: 0, kind: input, shape index: {}]
  %s1 = inlined_call_operand.hbm [shape: f32[8,16,16], index: 1, kind: input, shape index: {}]
  %s2 = inlined_call_operand.vmem [shape: f32[8,16,16], index: 2, kind: output, shape index: {}]
  %s3 = sld [smem:[#allocation0]]
  $region49: #{nconv.1} parent=0
    _
  %s5 = ssub.s32 1, %s3
  %s6 = scalar_select 0, %s5, %s3
  $region1: #{nconv.1} parent=0
    #allocation2 [shape = 'u8[8192]{0}', space=vmem, size = 0x2000, scoped, tag = 'input window, operand 0, single buffered']
    #allocation3 [shape = 's32[2]{0}', space=sflag, size = 0x8, scoped, tag = 'scoped memory for nconv.1']
    #allocation4 [shape = 'u8[16384]{0}', space=vmem, size = 0x4000, scoped, tag = 'input window, operand 1']
    #allocation5 [shape = 's32[2]{0}', space=sflag, size = 0x8, scoped, tag = 'scoped memory for nconv.1']
    %7 = vsyncpa [#allocation3], 0
    %8 = vsyncpa [#allocation5], 0
    %s9 = scalar_lea.sflag [#allocation5], 1
    %10 = vsyncpa %s9, 0
    loop: start=0, step=1, limit=10
    $region2: #{nconv.1} parent=1 // loop_pre_header
      _
    $region3: #{nconv.1} parent=1 // loop_header
      %s12 = sphi 0, %s16
      %p13 = scmp.ge.s32.totalorder %s12, 10
      %s20 = sphi 0, %s20
      %s22 = sphi 0, %s20
      %s23 = sphi 0, %s22
      %s37 = sphi 0, %s23
      %s43 = sphi 0, %s45
      %s46 = sphi 0, %s43
      %s47 = sphi 0, %s46
      %s63 = sphi 0, %s47
      %s69 = sphi 0, %s71
      %s72 = sphi 0, %s69
      %s73 = sphi 0, %s72
      %s89 = sphi 0, %s73
    $region4: #{nconv.1} parent=1 // loop_header_branch
      %15 = sbr.rel (%p13) target = $region8
    $region5: #{nconv.1} parent=1 // loop_body
      %s17 = ssub.s32 %s12, 1
      %s18 = ssub.s32 %s12, 2
      %s19 = sadd.s32 %s12, 1
      %s21 = sadd.s32 %s20, 1
      %p24 = scmp.eq.s32.totalorder %s12, 7
      %p25 = scmp.ne.s32.totalorder %s20, %s22
      %p26 = scmp.eq.s32.totalorder %s12, 0
      %p27 = por %p25, %p26
      %p28 = scmp.ne.s32.totalorder %s20, %s22
      %p29 = scmp.eq.s32.totalorder %s17, 7
      %p30 = por %p28, %p29
      %p31 = scmp.ne.s32.totalorder %s22, %s23
      %p32 = scmp.eq.s32.totalorder %s17, 0
      %p33 = por %p31, %p32
      %p34 = scmp.ne.s32.totalorder %s22, %s23
      %p35 = scmp.eq.s32.totalorder %s18, 7
      %p36 = por %p34, %p35
      %p38 = scmp.ne.s32.totalorder %s23, %s37
      %p39 = scmp.eq.s32.totalorder %s18, 0
      %p40 = por %p38, %p39
      %s41 = ssub.s32 %s12, %s19
      %p42 = scmp.eq.s32.totalorder %s41, 0
      %s44 = sadd.s32 %s43, 1
      %s45 = scalar_select %p42, %s43, %s44
      %p48 = pneg %p42
      %p49 = scmp.eq.s32.totalorder %s12, 7
      %p50 = por %p48, %p49
      %p51 = scmp.ne.s32.totalorder %s43, %s46
      %p52 = scmp.eq.s32.totalorder %s12, 0
      %p53 = por %p51, %p52
      %p54 = scmp.ne.s32.totalorder %s43, %s46
      %p55 = scmp.eq.s32.totalorder %s17, 7
      %p56 = por %p54, %p55
      %p57 = scmp.ne.s32.totalorder %s46, %s47
      %p58 = scmp.eq.s32.totalorder %s17, 0
      %p59 = por %p57, %p58
      %p60 = scmp.ne.s32.totalorder %s46, %s47
      %p61 = scmp.eq.s32.totalorder %s18, 7
      %p62 = por %p60, %p61
      %p64 = scmp.ne.s32.totalorder %s47, %s63
      %p65 = scmp.eq.s32.totalorder %s18, 0
      %p66 = por %p64, %p65
      %s67 = ssub.s32 %s12, %s19
      %p68 = scmp.eq.s32.totalorder %s67, 0
      %s70 = sadd.s32 %s69, 1
      %s71 = scalar_select %p68, %s69, %s70
      %p74 = pneg %p68
      %p75 = scmp.eq.s32.totalorder %s12, 7
      %p76 = por %p74, %p75
      %p77 = scmp.ne.s32.totalorder %s69, %s72
      %p78 = scmp.eq.s32.totalorder %s12, 0
      %p79 = por %p77, %p78
      %p80 = scmp.ne.s32.totalorder %s69, %s72
      %p81 = scmp.eq.s32.totalorder %s17, 7
      %p82 = por %p80, %p81
      %p83 = scmp.ne.s32.totalorder %s72, %s73
      %p84 = scmp.eq.s32.totalorder %s17, 0
      %p85 = por %p83, %p84
      %p86 = scmp.ne.s32.totalorder %s72, %s73
      %p87 = scmp.eq.s32.totalorder %s18, 7
      %p88 = por %p86, %p87
      %p90 = scmp.ne.s32.totalorder %s73, %s89
      %p91 = scmp.eq.s32.totalorder %s18, 0
      %p92 = por %p90, %p91
      %p93 = scmp.le.s32.totalorder 1, %s12
      %p94 = scmp.lt.s32.totalorder %s12, 9
      %p95 = pnand %p93, %p94
      %p96 = pneg %p95
      // Predicated region
      $region9: #{nconv.1} parent=5 // pred_check
        _
      $region10: #{nconv.1} parent=5 // pred_check_branch
        %98 = sbr.rel (%p95) target = $region12
      $region11: #{nconv.1} parent=5 // pred_region
        %s99 = ssub.s32 %s12, 1
        // Predicated region
        $region13: #{nconv.1} parent=11 // pred_check
          %p100 = pneg %p33
        $region14: #{nconv.1} parent=11 // pred_check_branch
          %102 = sbr.rel (%p100) target = $region16
        $region15: #{nconv.1} parent=11 // pred_region
          %s104 = ssub.s32 256, 256
          %105 = vsyncadd [#allocation3], %s104
          %s106 = sshll.u32 [#allocation2], 4
          %s107 = int_to_ptr.vmem [resolvable:$true] %s106
          %112 = dma.hbm_to_vmem [thread:$0]  %s0, 256, %s107, [#allocation3], 128, 128, 8
        $region16: #{nconv.1} parent=11 // pred_fallthru
          _
      $region12: #{nconv.1} parent=5 // pred_fallthru
        _
      %p113 = scmp.lt.s32.totalorder %s12, 8
      // Predicated region
      $region17: #{nconv.1} parent=5 // pred_check
        %p114 = pneg %p113
      $region18: #{nconv.1} parent=5 // pred_check_branch
        %116 = sbr.rel (%p114) target = $region20
      $region19: #{nconv.1} parent=5 // pred_region
        // Predicated region
        $region21: #{nconv.1} parent=19 // pred_check
          %p117 = pneg %p53
        $region22: #{nconv.1} parent=19 // pred_check_branch
          %119 = sbr.rel (%p117) target = $region24
        $region23: #{nconv.1} parent=19 // pred_region
          %s120 = sand.u32 %s43, 1
          %s121 = scalar_lea.sflag [#allocation5], %s120
          %s122 = sand.u32 %s43, 1
          %s123 = smul.addr %s122, 16
          %s124 = scalar_lea.vmem [#allocation4], %s123
          %s126 = ssub.s32 256, 256
          %127 = vsyncadd %s121, %s126
          %s128 = smul.addr %s12, 2
          %s129 = smul.addr %s128, 128
          %s130 = scalar_lea.hbm %s1, %s129
          %s131 = sshll.u32 %s124, 4
          %s132 = int_to_ptr.vmem [resolvable:$true] %s131
          %137 = dma.hbm_to_vmem [thread:$0]  %s130, 256, %s132, %s121, 128, 128, 8
        $region24: #{nconv.1} parent=19 // pred_fallthru
          _
      $region20: #{nconv.1} parent=5 // pred_fallthru
        _
      %p138 = scmp.le.s32.totalorder 1, %s12
      %p139 = scmp.lt.s32.totalorder %s12, 9
      %p140 = pnand %p138, %p139
      %p141 = pneg %p140
      // Predicated region
      $region25: #{nconv.1} parent=5 // pred_check
        _
      $region26: #{nconv.1} parent=5 // pred_check_branch
        %143 = sbr.rel (%p140) target = $region28
      $region27: #{nconv.1} parent=5 // pred_region
        %s144 = ssub.s32 %s12, 1
        // Predicated region
        $region29: #{nconv.1} parent=27 // pred_check
          %p145 = pneg %p33
        $region30: #{nconv.1} parent=27 // pred_check_branch
          %147 = sbr.rel (%p145) target = $region32
        $region31: #{nconv.1} parent=27 // pred_region
          %148 = dma.done [#allocation3], 256
        $region32: #{nconv.1} parent=27 // pred_fallthru
          _
        %s149 = sand.u32 %s46, 1
        %s150 = scalar_lea.sflag [#allocation5], %s149
        %s151 = sand.u32 %s46, 1
        %s152 = smul.addr %s151, 16
        %s153 = scalar_lea.vmem [#allocation4], %s152
        // Predicated region
        $region33: #{nconv.1} parent=27 // pred_check
          %p154 = pneg %p59
        $region34: #{nconv.1} parent=27 // pred_check_branch
          %156 = sbr.rel (%p154) target = $region36
        $region35: #{nconv.1} parent=27 // pred_region
          %157 = dma.done %s150, 256
        $region36: #{nconv.1} parent=27 // pred_fallthru
          _
        %p158 = pneg %p33
        %p159 = pneg %p30
        %s160 = sand.u32 %s46, 1
        %s161 = scalar_lea.sflag [#allocation5], %s160
        %s162 = sand.u32 %s46, 1
        %s163 = smul.addr %s162, 16
        %s164 = scalar_lea.vmem [#allocation4], %s163
        %p165 = pneg %p59
        %p166 = pneg %p56
        %p167 = pneg %p85
        %p168 = pneg %p82
        %p169 = scmp.lt.s32.totalorder %s17, 7
        %s170 = scalar_select %p169, %s17, 7
        %s171 = smul.addr %s170, 2
        %s172 = smul.addr %s171, 8
        %s173 = scalar_lea.vmem %s2, %s172
        %p174 = scmp.lt.s32.totalorder %s17, 7
        %s175 = scalar_select %p174, %s17, 7
        %s176 = smul.addr %s175, 2
        %s177 = smul.addr %s176, 8
        %s178 = scalar_lea.vmem %s2, %s177
        %v179 = vld [vmem:[#allocation2] sm:$0xff]
        %v180 = vld [vmem:[#allocation2 + $0x8] sm:$0xff]
        %v181 = vld [vmem:[%s153] sm:$0xff]
        %v182 = vld [vmem:[%s153 + $0x8] sm:$0xff]
        %183 = vxpose.xlu0.b32.start [1/16] %v181, 128
        %184 = vxpose.xlu0.b32.cont [2/16] %v182, 128
        %185 = vxpose.xlu0.b32.cont [3/16] 0.0, 128
        %186 = vxpose.xlu0.b32.cont [4/16] 0.0, 128
        %187 = vxpose.xlu0.b32.cont [5/16] 0.0, 128
        %188 = vxpose.xlu0.b32.cont [6/16] 0.0, 128
        %189 = vxpose.xlu0.b32.cont [7/16] 0.0, 128
        %190 = vxpose.xlu0.b32.cont [8/16] 0.0, 128
        %191 = vxpose.xlu0.b32.cont [9/16] 0.0, 128
        %192 = vxpose.xlu0.b32.cont [10/16] 0.0, 128
        %193 = vxpose.xlu0.b32.cont [11/16] 0.0, 128
        %194 = vxpose.xlu0.b32.cont [12/16] 0.0, 128
        %195 = vxpose.xlu0.b32.cont [13/16] 0.0, 128
        %196 = vxpose.xlu0.b32.cont [14/16] 0.0, 128
        %197 = vxpose.xlu0.b32.cont [15/16] 0.0, 128
        %198 = vxpose.xlu0.b32.end [16/16] 0.0, 128
        %v199 = vpop.trf.xlu0
        %v200 = vpop.trf.xlu0
        %v201 = vpop.trf.xlu0
        %v202 = vpop.trf.xlu0
        %v203 = vpop.trf.xlu0
        %v204 = vpop.trf.xlu0
        %v205 = vpop.trf.xlu0
        %v206 = vpop.trf.xlu0
        %v207 = vpop.trf.xlu0
        %v208 = vpop.trf.xlu0
        %v209 = vpop.trf.xlu0
        %v210 = vpop.trf.xlu0
        %v211 = vpop.trf.xlu0
        %v212 = vpop.trf.xlu0
        %v213 = vpop.trf.xlu0
        %v214 = vpop.trf.xlu0
        %vm215 = vcmask 130048
        %v217 = vsel %vm215, %v199, 0
        %v220 = vsel %vm215, %v200, 0
        %222 = vmatprep.subr.mxu0 0.0
        %223 = vmatpush1.msra.mxu0 %v179
        %224 = vmatprep.subr.mxu0 0.0
        %225 = vmatpush1.msra.mxu0 %v180
        %226 = vmatprep.subr.mxu0 0.0
        %227 = vmatpush1.msra.mxu0 0.0
        %228 = vmatprep.subr.mxu0 0.0
        %229 = vmatpush1.msra.mxu0 0.0
        %230 = vmatprep.subr.mxu0 0.0
        %231 = vmatpush1.msra.mxu0 0.0
        %232 = vmatprep.subr.mxu0 0.0
        %233 = vmatpush1.msra.mxu0 0.0
        %234 = vmatprep.subr.mxu0 0.0
        %235 = vmatpush1.msra.mxu0 0.0
        %236 = vmatprep.subr.mxu0 0.0
        %237 = vmatpush1.msra.mxu0 0.0
        %238 = vmatprep.subr.mxu0 0.0
        %239 = vmatpush1.msra.mxu0 0.0
        %240 = vmatprep.subr.mxu0 0.0
        %241 = vmatpush1.msra.mxu0 0.0
        %242 = vmatprep.subr.mxu0 0.0
        %243 = vmatpush1.msra.mxu0 0.0
        %244 = vmatprep.subr.mxu0 0.0
        %245 = vmatpush1.msra.mxu0 0.0
        %246 = vmatprep.subr.mxu0 0.0
        %247 = vmatpush1.msra.mxu0 0.0
        %248 = vmatprep.subr.mxu0 0.0
        %249 = vmatpush1.msra.mxu0 0.0
        %250 = vmatprep.subr.mxu0 0.0
        %251 = vmatpush1.msra.mxu0 0.0
        %252 = vmatprep.subr.mxu0 0.0
        %253 = vmatpush1.msra.mxu0 0.0
        %254 = vmatprep.subr.mxu0 0.0
        %255 = vmatpush1.msra.mxu0 0.0
        %256 = vmatprep.subr.mxu0 0.0
        %257 = vmatpush1.msra.mxu0 0.0
        %258 = vmatprep.subr.mxu0 0.0
        %259 = vmatpush1.msra.mxu0 0.0
        %260 = vmatprep.subr.mxu0 0.0
        %261 = vmatpush1.msra.mxu0 0.0
        %262 = vmatprep.subr.mxu0 0.0
        %263 = vmatpush1.msra.mxu0 0.0
        %264 = vmatprep.subr.mxu0 0.0
        %265 = vmatpush1.msra.mxu0 0.0
        %266 = vmatprep.subr.mxu0 0.0
        %267 = vmatpush1.msra.mxu0 0.0
        %268 = vmatprep.subr.mxu0 0.0
        %269 = vmatpush1.msra.mxu0 0.0
        %270 = vmatprep.subr.mxu0 0.0
        %271 = vmatpush1.msra.mxu0 0.0
        %272 = vmatprep.subr.mxu0 0.0
        %273 = vmatpush1.msra.mxu0 0.0
        %274 = vmatprep.subr.mxu0 0.0
        %275 = vmatpush1.msra.mxu0 0.0
        %276 = vmatprep.subr.mxu0 0.0
        %277 = vmatpush1.msra.mxu0 0.0
        %278 = vmatprep.subr.mxu0 0.0
        %279 = vmatpush1.msra.mxu0 0.0
        %280 = vmatprep.subr.mxu0 0.0
        %281 = vmatpush1.msra.mxu0 0.0
        %282 = vmatprep.subr.mxu0 0.0
        %283 = vmatpush1.msra.mxu0 0.0
        %284 = vmatprep.subr.mxu0 0.0
        %285 = vmatpush1.msra.mxu0 0.0
        %286 = vmatprep.mubr.f32.mxu0 0.0
        %287 = vmatmul.mubr.f32.gmra.mrb[0].mxu0 %v217
        %v288 = vpop.f32.mrb[0].mxu0
        %v289 = vadd.f32 0.0, %v288
        %v290 = vpop.f32.mrb[0].mxu0
        %291 = vmatprep.mubr.f32.mxu0 0.0
        %292 = vmatmul.mubr.f32.gmra.mrb[0].mxu0 %v220
        %v293 = vpop.f32.mrb[0].mxu0
        %v294 = vadd.f32 0.0, %v293
        %v295 = vpop.f32.mrb[0].mxu0
        %296 = vdwg.mxu0
        %297 = vst.msk [vmem:[%s178] sm:$0xff] %vm215, %v289
        %298 = vst.msk [vmem:[%s178 + $0x8] sm:$0xff] %vm215, %v294
        %p299 = scmp.lt.s32.totalorder %s17, 7
        %s300 = scalar_select %p299, %s17, 7
        %s301 = smul.addr %s300, 2
        %s302 = smul.addr %s301, 8
        %s303 = scalar_lea.vmem %s2, %s302
        // Predicated region
        $region37: #{nconv.1} parent=27 // pred_check
          %p304 = pneg %p82
        $region38: #{nconv.1} parent=27 // pred_check_branch
          %306 = sbr.rel (%p304) target = $region40
        $region39: #{nconv.1} parent=27 // pred_region
          _
        $region40: #{nconv.1} parent=27 // pred_fallthru
          _
      $region28: #{nconv.1} parent=5 // pred_fallthru
        _
      %p307 = scmp.le.s32.totalorder 2, %s12
      // Predicated region
      $region41: #{nconv.1} parent=5 // pred_check
        %p308 = pneg %p307
      $region42: #{nconv.1} parent=5 // pred_check_branch
        %310 = sbr.rel (%p308) target = $region44
      $region43: #{nconv.1} parent=5 // pred_region
        %s311 = ssub.s32 %s12, 2
        // Predicated region
        $region45: #{nconv.1} parent=43 // pred_check
          %p312 = pneg %p88
        $region46: #{nconv.1} parent=43 // pred_check_branch
          %314 = sbr.rel (%p312) target = $region48
        $region47: #{nconv.1} parent=43 // pred_region
          %p315 = scmp.lt.s32.totalorder %s18, 7
          %s316 = scalar_select %p315, %s18, 7
          %s317 = smul.addr %s316, 2
          %s318 = smul.addr %s317, 8
          %s319 = scalar_lea.vmem %s2, %s318
        $region48: #{nconv.1} parent=43 // pred_fallthru
          _
      $region44: #{nconv.1} parent=5 // pred_fallthru
        _
    $region6: #{nconv.1} parent=1 // loop_footer
      %s16 = sadd.s32 1, %s12
    $region7: #{nconv.1} parent=1 // loop_footer_branch
      %11 = sbr.rel target = $region3
    $region8: #{nconv.1} parent=1 // loop_exit
      _
    %320 = vsyncpa [#allocation3], 1
    %s321 = scalar_lea.sflag [#allocation3], 1
    %322 = vsyncpa %s321, 1
    %323 = vsyncpa [#allocation5], 1
    %s324 = scalar_lea.sflag [#allocation5], 1
    %325 = vsyncpa %s324, 1

</llo_original>
